<compile_context>
chip_gen: v7x
topology: tpu7x:2x2x1
jax: 0.10.0
libtpu: 0.0.40
codegen_flags: <defaults>
</compile_context>

<pallas_src>
import functools

import jax
import jax.numpy as jnp
from jax.experimental import pallas as pl
from jax.experimental.pallas import tpu as pltpu


def _round_up(n, m):
    return (n + m - 1) // m * m


def _mlp_kernel(x_ref,
                w1_ref, b1_ref,
                w2_ref, b2_ref,
                w3_ref, b3_ref,
                w4_ref, b4_ref,
                o_ref):
    x = x_ref[...]

    h = jnp.dot(x, w1_ref[...], preferred_element_type=jnp.float32) + b1_ref[...]
    h = jnp.maximum(h, 0.0)

    h = jnp.dot(h, w2_ref[...], preferred_element_type=jnp.float32) + b2_ref[...]
    h = jnp.maximum(h, 0.0)

    h = jnp.dot(h, w3_ref[...], preferred_element_type=jnp.float32) + b3_ref[...]
    h = jnp.maximum(h, 0.0)

    logits = jnp.dot(h, w4_ref[...], preferred_element_type=jnp.float32) + b4_ref[...]
    o_ref[...] = jax.nn.sigmoid(logits).astype(o_ref.dtype)


@functools.partial(jax.jit, static_argnames=("batch_tile",))
def torcs_mlp_nn_acc(x, params, batch_tile=None):
    """Forward pass of torcs_mlp_NN_acc.

    x: [B, num_features] float32
    params: dict with w1..w4 ([in, out]) and b1..b4 ([1, out]).
    batch_tile: optional override for the batch tile; picked automatically if
      None (single grid step for small B, 512-row tiles for large B).
    """
    w1, b1 = params["w1"], params["b1"]
    w2, b2 = params["w2"], params["b2"]
    w3, b3 = params["w3"], params["b3"]
    w4, b4 = params["w4"], params["b4"]

    B, F = x.shape
    H = w1.shape[1]
    O = w4.shape[1]

    # --- tile selection (static; shapes are known under jit) -----------------
    if batch_tile is None:
        if B <= 512:
            # Single grid step: removes all inter-step pipeline overhead.
            batch_tile = max(8, _round_up(B, 8))
        else:
            # Large tile: amortizes ~600-cycle per-step cost, keeps the MXU fed,
            # and leaves >= 2 grid steps so v7x can shard the batch across TCs.
            batch_tile = 512
    batch_tile = max(8, _round_up(int(batch_tile), 8))  # f32 sublane tiling

    # --- pad batch so B divides batch_tile (no hard assert) ------------------
    B_pad = _round_up(B, batch_tile)
    if B_pad != B:
        x = jnp.pad(x, ((0, B_pad - B), (0, 0)))

    grid = (B_pad // batch_tile,)

    # Weights / biases: full-array blocks, same block every grid step
    # (kept resident in VMEM; ~22 KB total, so default buffering is fine).
    def whole(shape):
        return pl.BlockSpec(shape, lambda i: (0, 0))

    out = pl.pallas_call(
        _mlp_kernel,
        out_shape=jax.ShapeDtypeStruct((B_pad, O), jnp.float32),
        grid=grid,
        in_specs=[
            pl.BlockSpec((batch_tile, F), lambda i: (i, 0)),  # x tile
            whole((F, H)), whole((1, H)),   # lin1
            whole((H, H)), whole((1, H)),   # lin2
            whole((H, H)), whole((1, H)),   # lin3
            whole((H, O)), whole((1, O)),   # lin4
        ],
        out_specs=pl.BlockSpec((batch_tile, O), lambda i: (i, 0)),
        compiler_params=pltpu.CompilerParams(
            dimension_semantics=("parallel",)),
    )(x, w1, b1, w2, b2, w3, b3, w4, b4)

    if B_pad != B:
        out = out[:B]
    return out


def init_params(key, num_features, num_nodes_hidden, num_output):
    """Deterministic init mimicking nn.Linear default (U[-1/sqrt(in), 1/sqrt(in)]).

    Weights are stored as [in, out] (transpose of PyTorch's [out, in]).
    """
    dims = [(num_features, num_nodes_hidden),
            (num_nodes_hidden, num_nodes_hidden),
            (num_nodes_hidden, num_nodes_hidden),
            (num_nodes_hidden, num_output)]
    params = {}
    for idx, (din, dout) in enumerate(dims, start=1):
        key, kw, kb = jax.random.split(key, 3)
        bound = 1.0 / (din ** 0.5)
        params[f"w{idx}"] = jax.random.uniform(
            kw, (din, dout), jnp.float32, -bound, bound)
        params[f"b{idx}"] = jax.random.uniform(
            kb, (1, dout), jnp.float32, -bound, bound)
    return params


def reference_forward(x, params):
    h = jnp.maximum(x @ params["w1"] + params["b1"], 0.0)
    h = jnp.maximum(h @ params["w2"] + params["b2"], 0.0)
    h = jnp.maximum(h @ params["w3"] + params["b3"], 0.0)
    return jax.nn.sigmoid(h @ params["w4"] + params["b4"])


if __name__ == "__main__":
    num_features = 16
    num_nodes_hidden = 32
    num_output = 4
    batch = 16

    key = jax.random.PRNGKey(0)
    key, kx = jax.random.split(key)
    x = jax.random.normal(kx, (batch, num_features), jnp.float32)
    params = init_params(key, num_features, num_nodes_hidden, num_output)

    # Small batch -> single grid step path.
    out = torcs_mlp_nn_acc(x, params)
    out = jax.block_until_ready(out)

    ref = reference_forward(x, params)
    assert out.shape == (batch, num_output)
    assert jnp.allclose(out, ref, atol=1e-5, rtol=1e-5), "mismatch vs reference"

    # Also exercise the tiled (multi grid-step) path with a non-divisible batch.
    key, kx2 = jax.random.split(key)
    x_big = jax.random.normal(kx2, (1037, num_features), jnp.float32)
    out_big = jax.block_until_ready(torcs_mlp_nn_acc(x_big, params))
    ref_big = reference_forward(x_big, params)
    assert out_big.shape == (1037, num_output)
    assert jnp.allclose(out_big, ref_big, atol=1e-5, rtol=1e-5), "mismatch (tiled path)"

    print("KERNEL_OK")
</pallas_src>

<mosaic_0001>
module attributes {stable_mosaic.version = 11 : i64} {
  func.func @_mlp_kernel(%arg0: i32, %arg1: memref<16x16xf32, #tpu.memory_space<vmem>>, %arg2: memref<16x32xf32, #tpu.memory_space<vmem>>, %arg3: memref<1x32xf32, #tpu.memory_space<vmem>>, %arg4: memref<32x32xf32, #tpu.memory_space<vmem>>, %arg5: memref<1x32xf32, #tpu.memory_space<vmem>>, %arg6: memref<32x32xf32, #tpu.memory_space<vmem>>, %arg7: memref<1x32xf32, #tpu.memory_space<vmem>>, %arg8: memref<32x4xf32, #tpu.memory_space<vmem>>, %arg9: memref<1x4xf32, #tpu.memory_space<vmem>>, %arg10: memref<16x4xf32, #tpu.memory_space<vmem>>) attributes {dimension_semantics = [#tpu.dimension_semantics<parallel>], iteration_bounds = array<i64: 1>, scalar_prefetch = 0 : i64, scratch_operands = 0 : i64, tpu.core_type = #tpu.core_type<tc>, window_params = [{transform_indices = @transform_0, window_bounds = array<i64: 16, 16>}, {pipeline_mode = #tpu.pipeline_mode<synchronous>, transform_indices = @transform_1, window_bounds = array<i64: 16, 32>}, {pipeline_mode = #tpu.pipeline_mode<synchronous>, transform_indices = @transform_2, window_bounds = array<i64: 1, 32>}, {pipeline_mode = #tpu.pipeline_mode<synchronous>, transform_indices = @transform_3, window_bounds = array<i64: 32, 32>}, {pipeline_mode = #tpu.pipeline_mode<synchronous>, transform_indices = @transform_4, window_bounds = array<i64: 1, 32>}, {pipeline_mode = #tpu.pipeline_mode<synchronous>, transform_indices = @transform_5, window_bounds = array<i64: 32, 32>}, {pipeline_mode = #tpu.pipeline_mode<synchronous>, transform_indices = @transform_6, window_bounds = array<i64: 1, 32>}, {pipeline_mode = #tpu.pipeline_mode<synchronous>, transform_indices = @transform_7, window_bounds = array<i64: 32, 4>}, {pipeline_mode = #tpu.pipeline_mode<synchronous>, transform_indices = @transform_8, window_bounds = array<i64: 1, 4>}, {transform_indices = @transform_9, window_bounds = array<i64: 16, 4>}]} {
    %c0 = arith.constant 0 : index
    %c0_0 = arith.constant 0 : index
    %0 = vector.load %arg1[%c0, %c0_0] : memref<16x16xf32, #tpu.memory_space<vmem>>, vector<16x16xf32>
    %c0_1 = arith.constant 0 : index
    %c0_2 = arith.constant 0 : index
    %1 = vector.load %arg2[%c0_1, %c0_2] : memref<16x32xf32, #tpu.memory_space<vmem>>, vector<16x32xf32>
    %cst = arith.constant dense<0.000000e+00> : vector<16x32xf32>
    %2 = tpu.matmul %0, %1, %cst {dimension_numbers = #tpu.dot_dimension_numbers<[1], [0], [0], [1], [0, 0, 1, 1], [], []>} : vector<16x16xf32>, vector<16x32xf32>, vector<16x32xf32> -> vector<16x32xf32>
    %c0_3 = arith.constant 0 : index
    %c0_4 = arith.constant 0 : index
    %3 = vector.load %arg3[%c0_3, %c0_4] : memref<1x32xf32, #tpu.memory_space<vmem>>, vector<1x32xf32>
    %4 = vector.broadcast %3 : vector<1x32xf32> to vector<16x32xf32>
    %5 = arith.addf %2, %4 : vector<16x32xf32>
    %cst_5 = arith.constant 0.000000e+00 : f32
    %6 = vector.broadcast %cst_5 : f32 to vector<16x32xf32>
    %7 = arith.maximumf %5, %6 : vector<16x32xf32>
    %c0_6 = arith.constant 0 : index
    %c0_7 = arith.constant 0 : index
    %8 = vector.load %arg4[%c0_6, %c0_7] : memref<32x32xf32, #tpu.memory_space<vmem>>, vector<32x32xf32>
    %cst_8 = arith.constant dense<0.000000e+00> : vector<16x32xf32>
    %9 = tpu.matmul %7, %8, %cst_8 {dimension_numbers = #tpu.dot_dimension_numbers<[1], [0], [0], [1], [0, 0, 1, 1], [], []>} : vector<16x32xf32>, vector<32x32xf32>, vector<16x32xf32> -> vector<16x32xf32>
    %c0_9 = arith.constant 0 : index
    %c0_10 = arith.constant 0 : index
    %10 = vector.load %arg5[%c0_9, %c0_10] : memref<1x32xf32, #tpu.memory_space<vmem>>, vector<1x32xf32>
    %11 = vector.broadcast %10 : vector<1x32xf32> to vector<16x32xf32>
    %12 = arith.addf %9, %11 : vector<16x32xf32>
    %cst_11 = arith.constant 0.000000e+00 : f32
    %13 = vector.broadcast %cst_11 : f32 to vector<16x32xf32>
    %14 = arith.maximumf %12, %13 : vector<16x32xf32>
    %c0_12 = arith.constant 0 : index
    %c0_13 = arith.constant 0 : index
    %15 = vector.load %arg6[%c0_12, %c0_13] : memref<32x32xf32, #tpu.memory_space<vmem>>, vector<32x32xf32>
    %cst_14 = arith.constant dense<0.000000e+00> : vector<16x32xf32>
    %16 = tpu.matmul %14, %15, %cst_14 {dimension_numbers = #tpu.dot_dimension_numbers<[1], [0], [0], [1], [0, 0, 1, 1], [], []>} : vector<16x32xf32>, vector<32x32xf32>, vector<16x32xf32> -> vector<16x32xf32>
    %c0_15 = arith.constant 0 : index
    %c0_16 = arith.constant 0 : index
    %17 = vector.load %arg7[%c0_15, %c0_16] : memref<1x32xf32, #tpu.memory_space<vmem>>, vector<1x32xf32>
    %18 = vector.broadcast %17 : vector<1x32xf32> to vector<16x32xf32>
    %19 = arith.addf %16, %18 : vector<16x32xf32>
    %cst_17 = arith.constant 0.000000e+00 : f32
    %20 = vector.broadcast %cst_17 : f32 to vector<16x32xf32>
    %21 = arith.maximumf %19, %20 : vector<16x32xf32>
    %c0_18 = arith.constant 0 : index
    %c0_19 = arith.constant 0 : index
    %22 = vector.load %arg8[%c0_18, %c0_19] : memref<32x4xf32, #tpu.memory_space<vmem>>, vector<32x4xf32>
    %cst_20 = arith.constant dense<0.000000e+00> : vector<16x4xf32>
    %23 = tpu.matmul %21, %22, %cst_20 {dimension_numbers = #tpu.dot_dimension_numbers<[1], [0], [0], [1], [0, 0, 1, 1], [], []>} : vector<16x32xf32>, vector<32x4xf32>, vector<16x4xf32> -> vector<16x4xf32>
    %c0_21 = arith.constant 0 : index
    %c0_22 = arith.constant 0 : index
    %24 = vector.load %arg9[%c0_21, %c0_22] : memref<1x4xf32, #tpu.memory_space<vmem>>, vector<1x4xf32>
    %25 = vector.broadcast %24 : vector<1x4xf32> to vector<16x4xf32>
    %26 = arith.addf %23, %25 : vector<16x4xf32>
    %27 = arith.negf %26 : vector<16x4xf32>
    %28 = math.exp %27 : vector<16x4xf32>
    %cst_23 = arith.constant 1.000000e+00 : f32
    %29 = vector.broadcast %cst_23 : f32 to vector<16x4xf32>
    %30 = arith.addf %29, %28 : vector<16x4xf32>
    %31 = arith.divf %29, %30 : vector<16x4xf32>
    %c0_24 = arith.constant 0 : index
    %c0_25 = arith.constant 0 : index
    %32 = vector.load %arg10[%c0_24, %c0_25] : memref<16x4xf32, #tpu.memory_space<vmem>>, vector<16x4xf32>
    tpu.vector_store %arg10[%c0_24, %c0_25], %31 {strides = array<i32>} : memref<16x4xf32, #tpu.memory_space<vmem>>, vector<16x4xf32>,
    return
  }
  func.func @transform_0(%arg0: i32) -> (i32, i32) {
    %c0_i32 = arith.constant 0 : i32
    %c0_i32_0 = arith.constant 0 : i32
    return %arg0, %c0_i32 : i32, i32
  }
  func.func @transform_1(%arg0: i32) -> (i32, i32) {
    %c0_i32 = arith.constant 0 : i32
    %c0_i32_0 = arith.constant 0 : i32
    %c0_i32_1 = arith.constant 0 : i32
    return %c0_i32, %c0_i32_0 : i32, i32
  }
  func.func @transform_2(%arg0: i32) -> (i32, i32) {
    %c0_i32 = arith.constant 0 : i32
    %c0_i32_0 = arith.constant 0 : i32
    %c0_i32_1 = arith.constant 0 : i32
    return %c0_i32, %c0_i32_0 : i32, i32
  }
  func.func @transform_3(%arg0: i32) -> (i32, i32) {
    %c0_i32 = arith.constant 0 : i32
    %c0_i32_0 = arith.constant 0 : i32
    %c0_i32_1 = arith.constant 0 : i32
    return %c0_i32, %c0_i32_0 : i32, i32
  }
  func.func @transform_4(%arg0: i32) -> (i32, i32) {
    %c0_i32 = arith.constant 0 : i32
    %c0_i32_0 = arith.constant 0 : i32
    %c0_i32_1 = arith.constant 0 : i32
    return %c0_i32, %c0_i32_0 : i32, i32
  }
  func.func @transform_5(%arg0: i32) -> (i32, i32) {
    %c0_i32 = arith.constant 0 : i32
    %c0_i32_0 = arith.constant 0 : i32
    %c0_i32_1 = arith.constant 0 : i32
    return %c0_i32, %c0_i32_0 : i32, i32
  }
  func.func @transform_6(%arg0: i32) -> (i32, i32) {
    %c0_i32 = arith.constant 0 : i32
    %c0_i32_0 = arith.constant 0 : i32
    %c0_i32_1 = arith.constant 0 : i32
    return %c0_i32, %c0_i32_0 : i32, i32
  }
  func.func @transform_7(%arg0: i32) -> (i32, i32) {
    %c0_i32 = arith.constant 0 : i32
    %c0_i32_0 = arith.constant 0 : i32
    %c0_i32_1 = arith.constant 0 : i32
    return %c0_i32, %c0_i32_0 : i32, i32
  }
  func.func @transform_8(%arg0: i32) -> (i32, i32) {
    %c0_i32 = arith.constant 0 : i32
    %c0_i32_0 = arith.constant 0 : i32
    %c0_i32_1 = arith.constant 0 : i32
    return %c0_i32, %c0_i32_0 : i32, i32
  }
  func.func @transform_9(%arg0: i32) -> (i32, i32) {
    %c0_i32 = arith.constant 0 : i32
    %c0_i32_0 = arith.constant 0 : i32
    return %arg0, %c0_i32 : i32, i32
  }
}

</mosaic_0001>

<llo_original>
// kernel: torcs_mlp_nn_acc.1
$region0: #{torcs_mlp_nn_acc.1}
  #allocation0 [shape = 'u32[]', space=smem, size = 0x4, offset = 0x4, fixed_abs, tag = 'smem constant byte address 0x4 - core index']
  #allocation1 [shape = 'u32[144,128]{1,0:T(1,128)}', space=vmem, size = 0x12000, scoped, tag = 'internal scratch']
  %s0 = inlined_call_operand.vmem [shape: f32[16,16], index: 0, kind: input, shape index: {}]
  %s1 = inlined_call_operand.hbm [shape: f32[16,32], index: 1, kind: input, shape index: {}]
  %s2 = inlined_call_operand.vmem [shape: f32[1,32], index: 2, kind: input, shape index: {}]
  %s3 = inlined_call_operand.vmem [shape: f32[32,32], index: 3, kind: input, shape index: {}]
  %s4 = inlined_call_operand.vmem [shape: f32[1,32], index: 4, kind: input, shape index: {}]
  %s5 = inlined_call_operand.hbm [shape: f32[32,32], index: 5, kind: input, shape index: {}]
  %s6 = inlined_call_operand.vmem [shape: f32[1,32], index: 6, kind: input, shape index: {}]
  %s7 = inlined_call_operand.vmem [shape: f32[32,4], index: 7, kind: input, shape index: {}]
  %s8 = inlined_call_operand.vmem [shape: f32[1,4], index: 8, kind: input, shape index: {}]
  %s9 = inlined_call_operand.vmem [shape: f32[16,4], index: 9, kind: output, shape index: {}]
  %s10 = sld [smem:[#allocation0]]
  $region54: #{torcs_mlp_nn_acc.1} parent=0
    _
  %s12 = ssub.s32 1, %s10
  %s13 = scalar_select 0, %s12, %s10
  $region1: #{torcs_mlp_nn_acc.1} parent=0
    #allocation2 [shape = 'u8[8192]{0}', space=vmem, size = 0x2000, scoped, tag = 'input window, operand 1, single buffered']
    #allocation3 [shape = 's32[1]{0}', space=sflag, size = 0x4, scoped, tag = 'scoped memory for torcs_mlp_nn_acc.1']
    #allocation4 [shape = 'u8[16384]{0}', space=vmem, size = 0x4000, scoped, tag = 'input window, operand 5, single buffered']
    #allocation5 [shape = 's32[1]{0}', space=sflag, size = 0x4, scoped, tag = 'scoped memory for torcs_mlp_nn_acc.1']
    %14 = vsyncpa [#allocation3], 0
    %15 = vsyncpa [#allocation5], 0
    // Predicated region
    $region2: #{torcs_mlp_nn_acc.1} parent=1 // pred_check
      _
    $region3: #{torcs_mlp_nn_acc.1} parent=1 // pred_check_branch
      %17 = sbr.rel (0) target = $region5
    $region4: #{torcs_mlp_nn_acc.1} parent=1 // pred_region
      _
    $region5: #{torcs_mlp_nn_acc.1} parent=1 // pred_fallthru
      _
    // Predicated region
    $region6: #{torcs_mlp_nn_acc.1} parent=1 // pred_check
      _
    $region7: #{torcs_mlp_nn_acc.1} parent=1 // pred_check_branch
      %19 = sbr.rel (0) target = $region9
    $region8: #{torcs_mlp_nn_acc.1} parent=1 // pred_region
      %s21 = ssub.s32 256, 256
      %22 = vsyncadd [#allocation3], %s21
      %s23 = sshll.u32 [#allocation2], 4
      %s24 = int_to_ptr.vmem [resolvable:$true] %s23
      %29 = dma.hbm_to_vmem [thread:$0]  %s1, 256, %s24, [#allocation3], 128, 128, 8
    $region9: #{torcs_mlp_nn_acc.1} parent=1 // pred_fallthru
      _
    // Predicated region
    $region10: #{torcs_mlp_nn_acc.1} parent=1 // pred_check
      _
    $region11: #{torcs_mlp_nn_acc.1} parent=1 // pred_check_branch
      %31 = sbr.rel (0) target = $region13
    $region12: #{torcs_mlp_nn_acc.1} parent=1 // pred_region
      _
    $region13: #{torcs_mlp_nn_acc.1} parent=1 // pred_fallthru
      _
    // Predicated region
    $region14: #{torcs_mlp_nn_acc.1} parent=1 // pred_check
      _
    $region15: #{torcs_mlp_nn_acc.1} parent=1 // pred_check_branch
      %33 = sbr.rel (0) target = $region17
    $region16: #{torcs_mlp_nn_acc.1} parent=1 // pred_region
      _
    $region17: #{torcs_mlp_nn_acc.1} parent=1 // pred_fallthru
      _
    // Predicated region
    $region18: #{torcs_mlp_nn_acc.1} parent=1 // pred_check
      _
    $region19: #{torcs_mlp_nn_acc.1} parent=1 // pred_check_branch
      %35 = sbr.rel (0) target = $region21
    $region20: #{torcs_mlp_nn_acc.1} parent=1 // pred_region
      _
    $region21: #{torcs_mlp_nn_acc.1} parent=1 // pred_fallthru
      _
    // Predicated region
    $region22: #{torcs_mlp_nn_acc.1} parent=1 // pred_check
      _
    $region23: #{torcs_mlp_nn_acc.1} parent=1 // pred_check_branch
      %37 = sbr.rel (0) target = $region25
    $region24: #{torcs_mlp_nn_acc.1} parent=1 // pred_region
      %s39 = ssub.s32 512, 512
      %40 = vsyncadd [#allocation5], %s39
      %s41 = sshll.u32 [#allocation4], 4
      %s42 = int_to_ptr.vmem [resolvable:$true] %s41
      %47 = dma.hbm_to_vmem [thread:$0]  %s5, 512, %s42, [#allocation5], 128, 128, 8
    $region25: #{torcs_mlp_nn_acc.1} parent=1 // pred_fallthru
      _
    // Predicated region
    $region26: #{torcs_mlp_nn_acc.1} parent=1 // pred_check
      _
    $region27: #{torcs_mlp_nn_acc.1} parent=1 // pred_check_branch
      %49 = sbr.rel (0) target = $region29
    $region28: #{torcs_mlp_nn_acc.1} parent=1 // pred_region
      _
    $region29: #{torcs_mlp_nn_acc.1} parent=1 // pred_fallthru
      _
    // Predicated region
    $region30: #{torcs_mlp_nn_acc.1} parent=1 // pred_check
      _
    $region31: #{torcs_mlp_nn_acc.1} parent=1 // pred_check_branch
      %51 = sbr.rel (0) target = $region33
    $region32: #{torcs_mlp_nn_acc.1} parent=1 // pred_region
      _
    $region33: #{torcs_mlp_nn_acc.1} parent=1 // pred_fallthru
      _
    // Predicated region
    $region34: #{torcs_mlp_nn_acc.1} parent=1 // pred_check
      _
    $region35: #{torcs_mlp_nn_acc.1} parent=1 // pred_check_branch
      %53 = sbr.rel (0) target = $region37
    $region36: #{torcs_mlp_nn_acc.1} parent=1 // pred_region
      _
    $region37: #{torcs_mlp_nn_acc.1} parent=1 // pred_fallthru
      _
    // Predicated region
    $region38: #{torcs_mlp_nn_acc.1} parent=1 // pred_check
      _
    $region39: #{torcs_mlp_nn_acc.1} parent=1 // pred_check_branch
      %55 = sbr.rel (0) target = $region41
    $region40: #{torcs_mlp_nn_acc.1} parent=1 // pred_region
      %56 = dma.done [#allocation3], 256
    $region41: #{torcs_mlp_nn_acc.1} parent=1 // pred_fallthru
      _
    // Predicated region
    $region42: #{torcs_mlp_nn_acc.1} parent=1 // pred_check
      _
    $region43: #{torcs_mlp_nn_acc.1} parent=1 // pred_check_branch
      %58 = sbr.rel (0) target = $region45
    $region44: #{torcs_mlp_nn_acc.1} parent=1 // pred_region
      %59 = dma.done [#allocation5], 512
    $region45: #{torcs_mlp_nn_acc.1} parent=1 // pred_fallthru
      _
    %v60 = vld [vmem:[%s0] sm:$0xff]
    %v61 = vld [vmem:[%s0 + $0x8] sm:$0xff]
    %v62 = vld [vmem:[#allocation2] sm:$0xff]
    %v63 = vld [vmem:[#allocation2 + $0x8] sm:$0xff]
    %v64 = vld [vmem:[%s2] sm:$0x1]
    %v66 = vlaneseq
    %v67 = vshrl.u32 %v66, 7
    %v68 = vsub.s32 0, %v67
    %v69 = vrot.slane %v64, %v68
    %vm71 = vcmask 130048
    %v73 = vsel %vm71, %v60, 0
    %v76 = vsel %vm71, %v61, 0
    %78 = vmatprep.subr.mxu0 0.0
    %79 = vmatpush1.msra.mxu0 %v62
    %80 = vmatprep.subr.mxu0 0.0
    %81 = vmatpush1.msra.mxu0 %v63
    %82 = vmatprep.subr.mxu0 0.0
    %83 = vmatpush1.msra.mxu0 0.0
    %84 = vmatprep.subr.mxu0 0.0
    %85 = vmatpush1.msra.mxu0 0.0
    %86 = vmatprep.subr.mxu0 0.0
    %87 = vmatpush1.msra.mxu0 0.0
    %88 = vmatprep.subr.mxu0 0.0
    %89 = vmatpush1.msra.mxu0 0.0
    %90 = vmatprep.subr.mxu0 0.0
    %91 = vmatpush1.msra.mxu0 0.0
    %92 = vmatprep.subr.mxu0 0.0
    %93 = vmatpush1.msra.mxu0 0.0
    %94 = vmatprep.subr.mxu0 0.0
    %95 = vmatpush1.msra.mxu0 0.0
    %96 = vmatprep.subr.mxu0 0.0
    %97 = vmatpush1.msra.mxu0 0.0
    %98 = vmatprep.subr.mxu0 0.0
    %99 = vmatpush1.msra.mxu0 0.0
    %100 = vmatprep.subr.mxu0 0.0
    %101 = vmatpush1.msra.mxu0 0.0
    %102 = vmatprep.subr.mxu0 0.0
    %103 = vmatpush1.msra.mxu0 0.0
    %104 = vmatprep.subr.mxu0 0.0
    %105 = vmatpush1.msra.mxu0 0.0
    %106 = vmatprep.subr.mxu0 0.0
    %107 = vmatpush1.msra.mxu0 0.0
    %108 = vmatprep.subr.mxu0 0.0
    %109 = vmatpush1.msra.mxu0 0.0
    %110 = vmatprep.subr.mxu0 0.0
    %111 = vmatpush1.msra.mxu0 0.0
    %112 = vmatprep.subr.mxu0 0.0
    %113 = vmatpush1.msra.mxu0 0.0
    %114 = vmatprep.subr.mxu0 0.0
    %115 = vmatpush1.msra.mxu0 0.0
    %116 = vmatprep.subr.mxu0 0.0
    %117 = vmatpush1.msra.mxu0 0.0
    %118 = vmatprep.subr.mxu0 0.0
    %119 = vmatpush1.msra.mxu0 0.0
    %120 = vmatprep.subr.mxu0 0.0
    %121 = vmatpush1.msra.mxu0 0.0
    %122 = vmatprep.subr.mxu0 0.0
    %123 = vmatpush1.msra.mxu0 0.0
    %124 = vmatprep.subr.mxu0 0.0
    %125 = vmatpush1.msra.mxu0 0.0
    %126 = vmatprep.subr.mxu0 0.0
    %127 = vmatpush1.msra.mxu0 0.0
    %128 = vmatprep.subr.mxu0 0.0
    %129 = vmatpush1.msra.mxu0 0.0
    %130 = vmatprep.subr.mxu0 0.0
    %131 = vmatpush1.msra.mxu0 0.0
    %132 = vmatprep.subr.mxu0 0.0
    %133 = vmatpush1.msra.mxu0 0.0
    %134 = vmatprep.subr.mxu0 0.0
    %135 = vmatpush1.msra.mxu0 0.0
    %136 = vmatprep.subr.mxu0 0.0
    %137 = vmatpush1.msra.mxu0 0.0
    %138 = vmatprep.subr.mxu0 0.0
    %139 = vmatpush1.msra.mxu0 0.0
    %140 = vmatprep.subr.mxu0 0.0
    %141 = vmatpush1.msra.mxu0 0.0
    %142 = vmatprep.mubr.f32.mxu0 0.0
    %143 = vmatmul.mubr.f32.gmra.mrb[0].mxu0 %v73
    %v144 = vpop.f32.mrb[0].mxu0
    %v145 = vadd.f32 %v69, %v144
    %v146 = vpop.f32.mrb[0].mxu0
    %147 = vmatprep.mubr.f32.mxu0 0.0
    %148 = vmatmul.mubr.f32.gmra.mrb[0].mxu0 %v76
    %v149 = vpop.f32.mrb[0].mxu0
    %v150 = vadd.f32 %v69, %v149
    %v151 = vpop.f32.mrb[0].mxu0
    %152 = vdwg.mxu0
    %v153 = vmax.f32 %v145, 0.0
    %v154 = vmax.f32 %v150, 0.0
    %v155 = vld [vmem:[%s3] sm:$0xff]
    %v156 = vld [vmem:[%s3 + $0x8] sm:$0xff]
    %v157 = vld [vmem:[%s3 + $0x10] sm:$0xff]
    %v158 = vld [vmem:[%s3 + $0x18] sm:$0xff]
    %v159 = vld [vmem:[%s4] sm:$0x1]
    %v161 = vlaneseq
    %v162 = vshrl.u32 %v161, 7
    %v163 = vsub.s32 0, %v162
    %v164 = vrot.slane %v159, %v163
    %vm166 = vcmask 261120
    %v168 = vsel %vm166, %v153, 0
    %v171 = vsel %vm166, %v154, 0
    %173 = vmatprep.subr.mxu0 0.0
    %174 = vmatpush1.msra.mxu0 %v155
    %175 = vmatprep.subr.mxu0 0.0
    %176 = vmatpush1.msra.mxu0 %v156
    %177 = vmatprep.subr.mxu0 0.0
    %178 = vmatpush1.msra.mxu0 %v157
    %179 = vmatprep.subr.mxu0 0.0
    %180 = vmatpush1.msra.mxu0 %v158
    %181 = vmatprep.subr.mxu0 0.0
    %182 = vmatpush1.msra.mxu0 0.0
    %183 = vmatprep.subr.mxu0 0.0
    %184 = vmatpush1.msra.mxu0 0.0
    %185 = vmatprep.subr.mxu0 0.0
    %186 = vmatpush1.msra.mxu0 0.0
    %187 = vmatprep.subr.mxu0 0.0
    %188 = vmatpush1.msra.mxu0 0.0
    %189 = vmatprep.subr.mxu0 0.0
    %190 = vmatpush1.msra.mxu0 0.0
    %191 = vmatprep.subr.mxu0 0.0
    %192 = vmatpush1.msra.mxu0 0.0
    %193 = vmatprep.subr.mxu0 0.0
    %194 = vmatpush1.msra.mxu0 0.0
    %195 = vmatprep.subr.mxu0 0.0
    %196 = vmatpush1.msra.mxu0 0.0
    %197 = vmatprep.subr.mxu0 0.0
    %198 = vmatpush1.msra.mxu0 0.0
    %199 = vmatprep.subr.mxu0 0.0
    %200 = vmatpush1.msra.mxu0 0.0
    %201 = vmatprep.subr.mxu0 0.0
    %202 = vmatpush1.msra.mxu0 0.0
    %203 = vmatprep.subr.mxu0 0.0
    %204 = vmatpush1.msra.mxu0 0.0
    %205 = vmatprep.subr.mxu0 0.0
    %206 = vmatpush1.msra.mxu0 0.0
    %207 = vmatprep.subr.mxu0 0.0
    %208 = vmatpush1.msra.mxu0 0.0
    %209 = vmatprep.subr.mxu0 0.0
    %210 = vmatpush1.msra.mxu0 0.0
    %211 = vmatprep.subr.mxu0 0.0
    %212 = vmatpush1.msra.mxu0 0.0
    %213 = vmatprep.subr.mxu0 0.0
    %214 = vmatpush1.msra.mxu0 0.0
    %215 = vmatprep.subr.mxu0 0.0
    %216 = vmatpush1.msra.mxu0 0.0
    %217 = vmatprep.subr.mxu0 0.0
    %218 = vmatpush1.msra.mxu0 0.0
    %219 = vmatprep.subr.mxu0 0.0
    %220 = vmatpush1.msra.mxu0 0.0
    %221 = vmatprep.subr.mxu0 0.0
    %222 = vmatpush1.msra.mxu0 0.0
    %223 = vmatprep.subr.mxu0 0.0
    %224 = vmatpush1.msra.mxu0 0.0
    %225 = vmatprep.subr.mxu0 0.0
    %226 = vmatpush1.msra.mxu0 0.0
    %227 = vmatprep.subr.mxu0 0.0
    %228 = vmatpush1.msra.mxu0 0.0
    %229 = vmatprep.subr.mxu0 0.0
    %230 = vmatpush1.msra.mxu0 0.0
    %231 = vmatprep.subr.mxu0 0.0
    %232 = vmatpush1.msra.mxu0 0.0
    %233 = vmatprep.subr.mxu0 0.0
    %234 = vmatpush1.msra.mxu0 0.0
    %235 = vmatprep.subr.mxu0 0.0
    %236 = vmatpush1.msra.mxu0 0.0
    %237 = vmatprep.mubr.f32.mxu0 0.0
    %238 = vmatmul.mubr.f32.gmra.mrb[0].mxu0 %v168
    %v239 = vpop.f32.mrb[0].mxu0
    %v240 = vadd.f32 %v164, %v239
    %v241 = vpop.f32.mrb[0].mxu0
    %242 = vmatprep.mubr.f32.mxu0 0.0
    %243 = vmatmul.mubr.f32.gmra.mrb[0].mxu0 %v171
    %v244 = vpop.f32.mrb[0].mxu0
    %v245 = vadd.f32 %v164, %v244
    %v246 = vpop.f32.mrb[0].mxu0
    %247 = vdwg.mxu0
    %v248 = vmax.f32 %v240, 0.0
    %v249 = vmax.f32 %v245, 0.0
    %v250 = vld [vmem:[#allocation4] sm:$0xff]
    %v251 = vld [vmem:[#allocation4 + $0x8] sm:$0xff]
    %v252 = vld [vmem:[#allocation4 + $0x10] sm:$0xff]
    %v253 = vld [vmem:[#allocation4 + $0x18] sm:$0xff]
    %v254 = vld [vmem:[%s6] sm:$0x1]
    %v256 = vlaneseq
    %v257 = vshrl.u32 %v256, 7
    %v258 = vsub.s32 0, %v257
    %v259 = vrot.slane %v254, %v258
    %v262 = vsel %vm166, %v248, 0
    %v265 = vsel %vm166, %v249, 0
    %267 = vmatprep.subr.mxu0 0.0
    %268 = vmatpush1.msra.mxu0 %v250
    %269 = vmatprep.subr.mxu0 0.0
    %270 = vmatpush1.msra.mxu0 %v251
    %271 = vmatprep.subr.mxu0 0.0
    %272 = vmatpush1.msra.mxu0 %v252
    %273 = vmatprep.subr.mxu0 0.0
    %274 = vmatpush1.msra.mxu0 %v253
    %275 = vmatprep.subr.mxu0 0.0
    %276 = vmatpush1.msra.mxu0 0.0
    %277 = vmatprep.subr.mxu0 0.0
    %278 = vmatpush1.msra.mxu0 0.0
    %279 = vmatprep.subr.mxu0 0.0
    %280 = vmatpush1.msra.mxu0 0.0
    %281 = vmatprep.subr.mxu0 0.0
    %282 = vmatpush1.msra.mxu0 0.0
    %283 = vmatprep.subr.mxu0 0.0
    %284 = vmatpush1.msra.mxu0 0.0
    %285 = vmatprep.subr.mxu0 0.0
    %286 = vmatpush1.msra.mxu0 0.0
    %287 = vmatprep.subr.mxu0 0.0
    %288 = vmatpush1.msra.mxu0 0.0
    %289 = vmatprep.subr.mxu0 0.0
    %290 = vmatpush1.msra.mxu0 0.0
    %291 = vmatprep.subr.mxu0 0.0
    %292 = vmatpush1.msra.mxu0 0.0
    %293 = vmatprep.subr.mxu0 0.0
    %294 = vmatpush1.msra.mxu0 0.0
    %295 = vmatprep.subr.mxu0 0.0
    %296 = vmatpush1.msra.mxu0 0.0
    %297 = vmatprep.subr.mxu0 0.0
    %298 = vmatpush1.msra.mxu0 0.0
    %299 = vmatprep.subr.mxu0 0.0
    %300 = vmatpush1.msra.mxu0 0.0
    %301 = vmatprep.subr.mxu0 0.0
    %302 = vmatpush1.msra.mxu0 0.0
    %303 = vmatprep.subr.mxu0 0.0
    %304 = vmatpush1.msra.mxu0 0.0
    %305 = vmatprep.subr.mxu0 0.0
    %306 = vmatpush1.msra.mxu0 0.0
    %307 = vmatprep.subr.mxu0 0.0
    %308 = vmatpush1.msra.mxu0 0.0
    %309 = vmatprep.subr.mxu0 0.0
    %310 = vmatpush1.msra.mxu0 0.0
    %311 = vmatprep.subr.mxu0 0.0
    %312 = vmatpush1.msra.mxu0 0.0
    %313 = vmatprep.subr.mxu0 0.0
    %314 = vmatpush1.msra.mxu0 0.0
    %315 = vmatprep.subr.mxu0 0.0
    %316 = vmatpush1.msra.mxu0 0.0
    %317 = vmatprep.subr.mxu0 0.0
    %318 = vmatpush1.msra.mxu0 0.0
    %319 = vmatprep.subr.mxu0 0.0
    %320 = vmatpush1.msra.mxu0 0.0
    %321 = vmatprep.subr.mxu0 0.0
    %322 = vmatpush1.msra.mxu0 0.0
    %323 = vmatprep.subr.mxu0 0.0
    %324 = vmatpush1.msra.mxu0 0.0
    %325 = vmatprep.subr.mxu0 0.0
    %326 = vmatpush1.msra.mxu0 0.0
    %327 = vmatprep.subr.mxu0 0.0
    %328 = vmatpush1.msra.mxu0 0.0
    %329 = vmatprep.subr.mxu0 0.0
    %330 = vmatpush1.msra.mxu0 0.0
    %331 = vmatprep.mubr.f32.mxu0 0.0
    %332 = vmatmul.mubr.f32.gmra.mrb[0].mxu0 %v262
    %v333 = vpop.f32.mrb[0].mxu0
    %v334 = vadd.f32 %v259, %v333
    %v335 = vpop.f32.mrb[0].mxu0
    %336 = vmatprep.mubr.f32.mxu0 0.0
    %337 = vmatmul.mubr.f32.gmra.mrb[0].mxu0 %v265
    %v338 = vpop.f32.mrb[0].mxu0
    %v339 = vadd.f32 %v259, %v338
    %v340 = vpop.f32.mrb[0].mxu0
    %341 = vdwg.mxu0
    %v342 = vmax.f32 %v334, 0.0
    %v343 = vmax.f32 %v339, 0.0
    %v344 = vld [vmem:[%s7] sm:$0xff]
    %v345 = vld [vmem:[%s7 + $0x8] sm:$0xff]
    %v346 = vld [vmem:[%s7 + $0x10] sm:$0xff]
    %v347 = vld [vmem:[%s7 + $0x18] sm:$0xff]
    %v348 = vld [vmem:[%s8] sm:$0x1]
    %v350 = vlaneseq
    %v351 = vshrl.u32 %v350, 7
    %v352 = vsub.s32 0, %v351
    %v353 = vrot.slane %v348, %v352
    %v356 = vsel %vm166, %v342, 0
    %v359 = vsel %vm166, %v343, 0
    %361 = vmatprep.subr.mxu0 0.0
    %362 = vmatpush1.msra.mxu0 %v344
    %363 = vmatprep.subr.mxu0 0.0
    %364 = vmatpush1.msra.mxu0 %v345
    %365 = vmatprep.subr.mxu0 0.0
    %366 = vmatpush1.msra.mxu0 %v346
    %367 = vmatprep.subr.mxu0 0.0
    %368 = vmatpush1.msra.mxu0 %v347
    %369 = vmatprep.subr.mxu0 0.0
    %370 = vmatpush1.msra.mxu0 0.0
    %371 = vmatprep.subr.mxu0 0.0
    %372 = vmatpush1.msra.mxu0 0.0
    %373 = vmatprep.subr.mxu0 0.0
    %374 = vmatpush1.msra.mxu0 0.0
    %375 = vmatprep.subr.mxu0 0.0
    %376 = vmatpush1.msra.mxu0 0.0
    %377 = vmatprep.subr.mxu0 0.0
    %378 = vmatpush1.msra.mxu0 0.0
    %379 = vmatprep.subr.mxu0 0.0
    %380 = vmatpush1.msra.mxu0 0.0
    %381 = vmatprep.subr.mxu0 0.0
    %382 = vmatpush1.msra.mxu0 0.0
    %383 = vmatprep.subr.mxu0 0.0
    %384 = vmatpush1.msra.mxu0 0.0
    %385 = vmatprep.subr.mxu0 0.0
    %386 = vmatpush1.msra.mxu0 0.0
    %387 = vmatprep.subr.mxu0 0.0
    %388 = vmatpush1.msra.mxu0 0.0
    %389 = vmatprep.subr.mxu0 0.0
    %390 = vmatpush1.msra.mxu0 0.0
    %391 = vmatprep.subr.mxu0 0.0
    %392 = vmatpush1.msra.mxu0 0.0
    %393 = vmatprep.subr.mxu0 0.0
    %394 = vmatpush1.msra.mxu0 0.0
    %395 = vmatprep.subr.mxu0 0.0
    %396 = vmatpush1.msra.mxu0 0.0
    %397 = vmatprep.subr.mxu0 0.0
    %398 = vmatpush1.msra.mxu0 0.0
    %399 = vmatprep.subr.mxu0 0.0
    %400 = vmatpush1.msra.mxu0 0.0
    %401 = vmatprep.subr.mxu0 0.0
    %402 = vmatpush1.msra.mxu0 0.0
    %403 = vmatprep.subr.mxu0 0.0
    %404 = vmatpush1.msra.mxu0 0.0
    %405 = vmatprep.subr.mxu0 0.0
    %406 = vmatpush1.msra.mxu0 0.0
    %407 = vmatprep.subr.mxu0 0.0
    %408 = vmatpush1.msra.mxu0 0.0
    %409 = vmatprep.subr.mxu0 0.0
    %410 = vmatpush1.msra.mxu0 0.0
    %411 = vmatprep.subr.mxu0 0.0
    %412 = vmatpush1.msra.mxu0 0.0
    %413 = vmatprep.subr.mxu0 0.0
    %414 = vmatpush1.msra.mxu0 0.0
    %415 = vmatprep.subr.mxu0 0.0
    %416 = vmatpush1.msra.mxu0 0.0
    %417 = vmatprep.subr.mxu0 0.0
    %418 = vmatpush1.msra.mxu0 0.0
    %419 = vmatprep.subr.mxu0 0.0
    %420 = vmatpush1.msra.mxu0 0.0
    %421 = vmatprep.subr.mxu0 0.0
    %422 = vmatpush1.msra.mxu0 0.0
    %423 = vmatprep.subr.mxu0 0.0
    %424 = vmatpush1.msra.mxu0 0.0
    %425 = vmatprep.mubr.f32.mxu0 0.0
    %426 = vmatmul.mubr.f32.gmra.mrb[0].mxu0 %v356
    %v427 = vpop.f32.mrb[0].mxu0
    %v428 = vadd.f32 %v353, %v427
    %v429 = vpop.f32.mrb[0].mxu0
    %430 = vmatprep.mubr.f32.mxu0 0.0
    %431 = vmatmul.mubr.f32.gmra.mrb[0].mxu0 %v359
    %v432 = vpop.f32.mrb[0].mxu0
    %v433 = vadd.f32 %v353, %v432
    %v434 = vpop.f32.mrb[0].mxu0
    %435 = vdwg.mxu0
    %v436 = vxor.u32 %v428, 2147483648
    %v437 = vxor.u32 %v433, 2147483648
    %v438 = vmul.f32 %v436, 1.442695
    %v439 = vpow.pop %v438
    %v440 = vmul.f32 %v437, 1.442695
    %v441 = vpow.pop %v440
    %v442 = vadd.f32 %v439, 1.0
    %v443 = vadd.f32 %v441, 1.0
    %v444 = vrcp.pop %v442
    %v445 = vmul.f32 1.0, %v444
    %v446 = vrcp.pop %v443
    %v447 = vmul.f32 1.0, %v446
    %vm448 = vcmask 31744
    %449 = vst.msk [vmem:[%s9] sm:$0xff] %vm448, %v445
    %450 = vst.msk [vmem:[%s9 + $0x8] sm:$0xff] %vm448, %v447
    // Predicated region
    $region46: #{torcs_mlp_nn_acc.1} parent=1 // pred_check
      _
    $region47: #{torcs_mlp_nn_acc.1} parent=1 // pred_check_branch
      %452 = sbr.rel (0) target = $region49
    $region48: #{torcs_mlp_nn_acc.1} parent=1 // pred_region
      _
    $region49: #{torcs_mlp_nn_acc.1} parent=1 // pred_fallthru
      _
    // Predicated region
    $region50: #{torcs_mlp_nn_acc.1} parent=1 // pred_check
      _
    $region51: #{torcs_mlp_nn_acc.1} parent=1 // pred_check_branch
      %454 = sbr.rel (0) target = $region53
    $region52: #{torcs_mlp_nn_acc.1} parent=1 // pred_region
      _
    $region53: #{torcs_mlp_nn_acc.1} parent=1 // pred_fallthru
      _
    %455 = vsyncpa [#allocation3], 1
    %456 = vsyncpa [#allocation5], 1

</llo_original>
